<compile_context>
chip_gen: v7x
topology: tpu7x:2x2x1
jax: 0.10.0
libtpu: 0.0.40
codegen_flags: <defaults>
</compile_context>

<pallas_src>
import jax
import jax.numpy as jnp
from jax.experimental import pallas as pl
from jax.experimental.pallas import tpu as pltpu


def _log_sigmoid(x):
    # Numerically stable logsigmoid, matches torch.nn.functional.logsigmoid.
    return jnp.minimum(x, 0.0) - jnp.log1p(jnp.exp(-jnp.abs(x)))


def line_ns_loss_kernel(left_tab_ref, right_tab_ref, left_idx_ref,
                        right_idx_ref, sign_ref, row_loss_ref):
    """One row-tile: gather rows from VMEM-resident tables, score, logsigmoid.

    left_tab_ref / right_tab_ref : (V, D)  f32   (whole tables, resident)
    left_idx_ref / right_idx_ref : (T, 1)  int32 (row indices for this tile)
    sign_ref                     : (T, 1)  f32   (+1 pos, -1 neg, 0 padding)
    row_loss_ref                 : (T, 1)  f32   (per-row loss contribution)
    """
    left_tab = left_tab_ref[...]            # (V, D)
    right_tab = right_tab_ref[...]          # (V, D)
    li = left_idx_ref[...]                  # (T, 1) int32
    ri = right_idx_ref[...]                 # (T, 1) int32
    sign = sign_ref[...]                    # (T, 1) f32

    tile = li.shape[0]
    vocab = left_tab.shape[0]

    # In-VMEM gather via one-hot matmul (exact: one-hot entries are 0/1).
    vocab_iota = jax.lax.broadcasted_iota(jnp.int32, (tile, vocab), 1)
    left_oh = (li == vocab_iota).astype(left_tab.dtype)     # (T, V)
    right_oh = (ri == vocab_iota).astype(right_tab.dtype)   # (T, V)
    left = jnp.dot(left_oh, left_tab,
                   preferred_element_type=jnp.float32)      # (T, D)
    right = jnp.dot(right_oh, right_tab,
                    preferred_element_type=jnp.float32)     # (T, D)

    # Scores on the VPU (elementwise mult) + XLU lane reduce.
    score = jnp.sum(left * right, axis=-1, keepdims=True)   # (T, 1)

    # Single fused logsigmoid over pos+neg rows; padding rows (sign==0) -> 0.
    x = sign * score
    logsig = jnp.minimum(x, 0.0) - jnp.log1p(jnp.exp(-jnp.abs(x)))
    row_loss_ref[...] = jnp.abs(sign) * logsig


def negative_sampling_loss_pallas(left_table, right_table, pos_nodes_idxs,
                                  pos_neighs_idxs, neg_neighs_idxs,
                                  *, tile_rows=512):
    """Fused gather + negative-sampling loss.

    left_table  : (V, D) table for the "u" side (node embeddings)
    right_table : (V, D) table for the "v"/neg side (node or context embeddings)
    """
    B = pos_nodes_idxs.shape[0]
    K = neg_neighs_idxs.shape[1]
    V, D = left_table.shape
    N = B * (K + 1)                      # one positive + K negatives per sample

    # Flatten the problem into N (left_idx, right_idx, sign) rows.
    left_idx = jnp.concatenate(
        [pos_nodes_idxs, jnp.repeat(pos_nodes_idxs, K)]).astype(jnp.int32)
    right_idx = jnp.concatenate(
        [pos_neighs_idxs, neg_neighs_idxs.reshape(-1)]).astype(jnp.int32)
    sign = jnp.concatenate(
        [jnp.ones((B,), jnp.float32), jnp.full((B * K,), -1.0, jnp.float32)])

    def _round_up(x, m):
        return (x + m - 1) // m * m

    tile = min(_round_up(tile_rows, 8), _round_up(N, 8))
    n_pad = _round_up(N, tile)
    pad = n_pad - N
    if pad:
        left_idx = jnp.pad(left_idx, (0, pad))      # index 0 is in-bounds
        right_idx = jnp.pad(right_idx, (0, pad))
        sign = jnp.pad(sign, (0, pad))              # sign 0 -> masked out

    left_idx = left_idx.reshape(n_pad, 1)
    right_idx = right_idx.reshape(n_pad, 1)
    sign = sign.reshape(n_pad, 1)
    num_tiles = n_pad // tile

    row_losses = pl.pallas_call(
        line_ns_loss_kernel,
        out_shape=jax.ShapeDtypeStruct((n_pad, 1), jnp.float32),
        grid=(num_tiles,),
        in_specs=[
            # Whole tables, same block every grid step -> stay resident in VMEM.
            pl.BlockSpec((V, D), lambda i: (0, 0)),
            pl.BlockSpec((V, D), lambda i: (0, 0)),
            # Per-tile row indices / signs.
            pl.BlockSpec((tile, 1), lambda i: (i, 0)),
            pl.BlockSpec((tile, 1), lambda i: (i, 0)),
            pl.BlockSpec((tile, 1), lambda i: (i, 0)),
        ],
        out_specs=pl.BlockSpec((tile, 1), lambda i: (i, 0)),
        compiler_params=pltpu.CompilerParams(
            dimension_semantics=("parallel",),
            vmem_limit_bytes=32 * 1024 * 1024,
        ),
    )(left_table, right_table, left_idx, right_idx, sign)

    # Tiny finalize in JAX: mean over the batch, negate.
    return -(jnp.sum(row_losses) / B)


def init_line_model_params(key, vocab_size, embedding_dim):
    """Matches LineModel.reset_parameters: U(-0.5/D, 0.5/D) for both tables."""
    k1, k2 = jax.random.split(key)
    bound = 0.5 / embedding_dim
    node_emb = jax.random.uniform(
        k1, (vocab_size, embedding_dim), jnp.float32, -bound, bound)
    ctx_emb = jax.random.uniform(
        k2, (vocab_size, embedding_dim), jnp.float32, -bound, bound)
    return node_emb, ctx_emb


def line_model_forward(node_emb, ctx_emb, pos_nodes_idxs, pos_neighs_idxs,
                       neg_neighs_idxs, order="first"):
    """LineModel.forward: gathers are fused into the Pallas loss kernel."""
    if order == "first":
        right_table = node_emb      # pos_neighs / neg_neighs from node table
    elif order == "second":
        right_table = ctx_emb       # pos_context / neg_context from ctx table
    else:
        raise ValueError(f"unknown order: {order}")
    return negative_sampling_loss_pallas(
        node_emb, right_table, pos_nodes_idxs, pos_neighs_idxs, neg_neighs_idxs)


def _reference_loss(pos_nodes, pos_neighs, neg_neighs):
    """Pure-JAX reference of NegativeSamplingLoss for a sanity check."""
    pos_score = jnp.sum(pos_nodes * pos_neighs, axis=-1)
    pos_loss = _log_sigmoid(pos_score)
    neg_score = jnp.einsum("bkd,bd->bk", neg_neighs, pos_nodes)
    neg_loss = jnp.sum(_log_sigmoid(-neg_score), axis=-1)
    return -jnp.mean(pos_loss + neg_loss)


if __name__ == "__main__":
    vocab_size = 50
    embedding_dim = 32
    batch = 8
    num_neg = 5

    key = jax.random.PRNGKey(0)
    kp, ki1, ki2, ki3 = jax.random.split(key, 4)

    node_emb, ctx_emb = init_line_model_params(kp, vocab_size, embedding_dim)

    pos_nodes_idxs = jax.random.randint(ki1, (batch,), 0, vocab_size)
    pos_neighs_idxs = jax.random.randint(ki2, (batch,), 0, vocab_size)
    neg_neighs_idxs = jax.random.randint(ki3, (batch, num_neg), 0, vocab_size)

    fwd = jax.jit(line_model_forward, static_argnames=("order",))

    loss_first = fwd(node_emb, ctx_emb, pos_nodes_idxs, pos_neighs_idxs,
                     neg_neighs_idxs, order="first")
    loss_second = fwd(node_emb, ctx_emb, pos_nodes_idxs, pos_neighs_idxs,
                      neg_neighs_idxs, order="second")
    jax.block_until_ready((loss_first, loss_second))

    # Correctness checks vs pure-JAX reference (explicit gathers).
    pn = jnp.take(node_emb, pos_nodes_idxs, axis=0)
    pv = jnp.take(node_emb, pos_neighs_idxs, axis=0)
    nn_ = jnp.take(node_emb, neg_neighs_idxs, axis=0)
    ref_first = _reference_loss(pn, pv, nn_)
    assert jnp.allclose(loss_first, ref_first, atol=1e-5, rtol=1e-5), (
        loss_first, ref_first)

    pc = jnp.take(ctx_emb, pos_neighs_idxs, axis=0)
    nc = jnp.take(ctx_emb, neg_neighs_idxs, axis=0)
    ref_second = _reference_loss(pn, pc, nc)
    assert jnp.allclose(loss_second, ref_second, atol=1e-5, rtol=1e-5), (
        loss_second, ref_second)

    print("KERNEL_OK")
</pallas_src>

<mosaic_0001>
module attributes {stable_mosaic.version = 11 : i64} {
  func.func @line_ns_loss_kernel(%arg0: i32, %arg1: memref<50x32xf32, #tpu.memory_space<vmem>>, %arg2: memref<50x32xf32, #tpu.memory_space<vmem>>, %arg3: memref<48x1xi32, #tpu.memory_space<vmem>>, %arg4: memref<48x1xi32, #tpu.memory_space<vmem>>, %arg5: memref<48x1xf32, #tpu.memory_space<vmem>>, %arg6: memref<48x1xf32, #tpu.memory_space<vmem>>) attributes {dimension_semantics = [#tpu.dimension_semantics<parallel>], iteration_bounds = array<i64: 1>, scalar_prefetch = 0 : i64, scratch_operands = 0 : i64, tpu.core_type = #tpu.core_type<tc>, window_params = [{pipeline_mode = #tpu.pipeline_mode<synchronous>, transform_indices = @transform_0, window_bounds = array<i64: 50, 32>}, {pipeline_mode = #tpu.pipeline_mode<synchronous>, transform_indices = @transform_1, window_bounds = array<i64: 50, 32>}, {transform_indices = @transform_2, window_bounds = array<i64: 48, 1>}, {transform_indices = @transform_3, window_bounds = array<i64: 48, 1>}, {transform_indices = @transform_4, window_bounds = array<i64: 48, 1>}, {transform_indices = @transform_5, window_bounds = array<i64: 48, 1>}]} {
    %c0 = arith.constant 0 : index
    %c0_0 = arith.constant 0 : index
    %0 = vector.load %arg1[%c0, %c0_0] : memref<50x32xf32, #tpu.memory_space<vmem>>, vector<50x32xf32>
    %c0_1 = arith.constant 0 : index
    %c0_2 = arith.constant 0 : index
    %1 = vector.load %arg2[%c0_1, %c0_2] : memref<50x32xf32, #tpu.memory_space<vmem>>, vector<50x32xf32>
    %c0_3 = arith.constant 0 : index
    %c0_4 = arith.constant 0 : index
    %2 = vector.load %arg3[%c0_3, %c0_4] : memref<48x1xi32, #tpu.memory_space<vmem>>, vector<48x1xi32>
    %c0_5 = arith.constant 0 : index
    %c0_6 = arith.constant 0 : index
    %3 = vector.load %arg4[%c0_5, %c0_6] : memref<48x1xi32, #tpu.memory_space<vmem>>, vector<48x1xi32>
    %c0_7 = arith.constant 0 : index
    %c0_8 = arith.constant 0 : index
    %4 = vector.load %arg5[%c0_7, %c0_8] : memref<48x1xf32, #tpu.memory_space<vmem>>, vector<48x1xf32>
    %5 = tpu.iota {dimensions = array<i32: 1>} : vector<48x50xi32>
    %6 = vector.broadcast %2 : vector<48x1xi32> to vector<48x50xi32>
    %7 = arith.cmpi eq, %6, %5 : vector<48x50xi32>
    %8 = arith.extui %7 : vector<48x50xi1> to vector<48x50xi32>
    %9 = arith.sitofp %8 : vector<48x50xi32> to vector<48x50xf32>
    %10 = vector.broadcast %3 : vector<48x1xi32> to vector<48x50xi32>
    %11 = arith.cmpi eq, %10, %5 : vector<48x50xi32>
    %12 = arith.extui %11 : vector<48x50xi1> to vector<48x50xi32>
    %13 = arith.sitofp %12 : vector<48x50xi32> to vector<48x50xf32>
    %cst = arith.constant dense<0.000000e+00> : vector<48x32xf32>
    %14 = tpu.matmul %9, %0, %cst {dimension_numbers = #tpu.dot_dimension_numbers<[1], [0], [0], [1], [0, 0, 1, 1], [], []>} : vector<48x50xf32>, vector<50x32xf32>, vector<48x32xf32> -> vector<48x32xf32>
    %cst_9 = arith.constant dense<0.000000e+00> : vector<48x32xf32>
    %15 = tpu.matmul %13, %1, %cst_9 {dimension_numbers = #tpu.dot_dimension_numbers<[1], [0], [0], [1], [0, 0, 1, 1], [], []>} : vector<48x50xf32>, vector<50x32xf32>, vector<48x32xf32> -> vector<48x32xf32>
    %16 = arith.mulf %14, %15 : vector<48x32xf32>
    %cst_10 = arith.constant dense<0.000000e+00> : vector<48xf32>
    %17 = vector.multi_reduction <add>, %16, %cst_10 [1] : vector<48x32xf32> to vector<48xf32>
    %18 = vector.shape_cast %17 : vector<48xf32> to vector<48x1xf32>
    %19 = arith.mulf %4, %18 : vector<48x1xf32>
    %cst_11 = arith.constant 0.000000e+00 : f32
    %20 = vector.broadcast %cst_11 : f32 to vector<48x1xf32>
    %21 = arith.minimumf %19, %20 : vector<48x1xf32>
    %22 = math.absf %19 : vector<48x1xf32>
    %cst_12 = arith.constant 0.000000e+00 : f32
    %23 = vector.broadcast %cst_12 : f32 to vector<48x1xf32>
    %24 = arith.subf %23, %22 : vector<48x1xf32>
    %25 = math.exp %24 : vector<48x1xf32>
    %26 = math.log1p %25 : vector<48x1xf32>
    %27 = arith.subf %21, %26 : vector<48x1xf32>
    %28 = math.absf %4 : vector<48x1xf32>
    %29 = arith.mulf %28, %27 : vector<48x1xf32>
    %c0_13 = arith.constant 0 : index
    %c0_14 = arith.constant 0 : index
    %30 = vector.load %arg6[%c0_13, %c0_14] : memref<48x1xf32, #tpu.memory_space<vmem>>, vector<48x1xf32>
    tpu.vector_store %arg6[%c0_13, %c0_14], %29 {strides = array<i32>} : memref<48x1xf32, #tpu.memory_space<vmem>>, vector<48x1xf32>,
    return
  }
  func.func @transform_0(%arg0: i32) -> (i32, i32) {
    %c0_i32 = arith.constant 0 : i32
    %c0_i32_0 = arith.constant 0 : i32
    %c0_i32_1 = arith.constant 0 : i32
    return %c0_i32, %c0_i32_0 : i32, i32
  }
  func.func @transform_1(%arg0: i32) -> (i32, i32) {
    %c0_i32 = arith.constant 0 : i32
    %c0_i32_0 = arith.constant 0 : i32
    %c0_i32_1 = arith.constant 0 : i32
    return %c0_i32, %c0_i32_0 : i32, i32
  }
  func.func @transform_2(%arg0: i32) -> (i32, i32) {
    %c0_i32 = arith.constant 0 : i32
    %c0_i32_0 = arith.constant 0 : i32
    return %arg0, %c0_i32 : i32, i32
  }
  func.func @transform_3(%arg0: i32) -> (i32, i32) {
    %c0_i32 = arith.constant 0 : i32
    %c0_i32_0 = arith.constant 0 : i32
    return %arg0, %c0_i32 : i32, i32
  }
  func.func @transform_4(%arg0: i32) -> (i32, i32) {
    %c0_i32 = arith.constant 0 : i32
    %c0_i32_0 = arith.constant 0 : i32
    return %arg0, %c0_i32 : i32, i32
  }
  func.func @transform_5(%arg0: i32) -> (i32, i32) {
    %c0_i32 = arith.constant 0 : i32
    %c0_i32_0 = arith.constant 0 : i32
    return %arg0, %c0_i32 : i32, i32
  }
}

</mosaic_0001>

<llo_original>
// kernel: line_model_forward.1
$region0: #{line_model_forward.1}
  #allocation0 [shape = 'u32[]', space=smem, size = 0x4, offset = 0x4, fixed_abs, tag = 'smem constant byte address 0x4 - core index']
  #allocation1 [shape = 'u32[144,128]{1,0:T(1,128)}', space=vmem, size = 0x12000, scoped, tag = 'internal scratch']
  %s0 = inlined_call_operand.vmem [shape: f32[50,32], index: 0, kind: input, shape index: {}, may-alias: {0,1}]
  %s1 = inlined_call_operand.vmem [shape: f32[50,32], index: 1, kind: input, shape index: {}, may-alias: {0,1}]
  %s2 = inlined_call_operand.vmem [shape: s32[48,1], index: 2, kind: input, shape index: {}]
  %s3 = inlined_call_operand.vmem [shape: s32[48,1], index: 3, kind: input, shape index: {}]
  %s4 = inlined_call_operand.vmem [shape: f32[48,1], index: 4, kind: input, shape index: {}]
  %s5 = inlined_call_operand.vmem [shape: f32[48,1], index: 5, kind: output, shape index: {}]
  %s6 = sld [smem:[#allocation0]]
  $region30: #{line_model_forward.1} parent=0
    _
  %s8 = ssub.s32 1, %s6
  %s9 = scalar_select 0, %s8, %s6
  // Predicated region
  $region2: #{line_model_forward.1} parent=0 // pred_check
    _
  $region3: #{line_model_forward.1} parent=0 // pred_check_branch
    %11 = sbr.rel (0) target = $region5
  $region4: #{line_model_forward.1} parent=0 // pred_region
    _
  $region5: #{line_model_forward.1} parent=0 // pred_fallthru
    _
  // Predicated region
  $region6: #{line_model_forward.1} parent=0 // pred_check
    _
  $region7: #{line_model_forward.1} parent=0 // pred_check_branch
    %13 = sbr.rel (0) target = $region9
  $region8: #{line_model_forward.1} parent=0 // pred_region
    _
  $region9: #{line_model_forward.1} parent=0 // pred_fallthru
    _
  // Predicated region
  $region10: #{line_model_forward.1} parent=0 // pred_check
    _
  $region11: #{line_model_forward.1} parent=0 // pred_check_branch
    %15 = sbr.rel (0) target = $region13
  $region12: #{line_model_forward.1} parent=0 // pred_region
    _
  $region13: #{line_model_forward.1} parent=0 // pred_fallthru
    _
  // Predicated region
  $region14: #{line_model_forward.1} parent=0 // pred_check
    _
  $region15: #{line_model_forward.1} parent=0 // pred_check_branch
    %17 = sbr.rel (0) target = $region17
  $region16: #{line_model_forward.1} parent=0 // pred_region
    _
  $region17: #{line_model_forward.1} parent=0 // pred_fallthru
    _
  // Predicated region
  $region18: #{line_model_forward.1} parent=0 // pred_check
    _
  $region19: #{line_model_forward.1} parent=0 // pred_check_branch
    %19 = sbr.rel (0) target = $region21
  $region20: #{line_model_forward.1} parent=0 // pred_region
    _
  $region21: #{line_model_forward.1} parent=0 // pred_fallthru
    _
  %v20 = vld [vmem:[%s0] sm:$0xff]
  %v21 = vld [vmem:[%s0 + $0x8] sm:$0xff]
  %v22 = vld [vmem:[%s0 + $0x10] sm:$0xff]
  %v23 = vld [vmem:[%s0 + $0x18] sm:$0xff]
  %v24 = vld [vmem:[%s0 + $0x20] sm:$0xff]
  %v25 = vld [vmem:[%s0 + $0x28] sm:$0xff]
  %v26 = vld [vmem:[%s0 + $0x30] sm:$0x3]
  %v27 = vld [vmem:[%s1] sm:$0xff]
  %v28 = vld [vmem:[%s1 + $0x8] sm:$0xff]
  %v29 = vld [vmem:[%s1 + $0x10] sm:$0xff]
  %v30 = vld [vmem:[%s1 + $0x18] sm:$0xff]
  %v31 = vld [vmem:[%s1 + $0x20] sm:$0xff]
  %v32 = vld [vmem:[%s1 + $0x28] sm:$0xff]
  %v33 = vld [vmem:[%s1 + $0x30] sm:$0x3]
  %v34 = vld [vmem:[%s2] sm:$0xff]
  %v35 = vld [vmem:[%s2 + $0x8] sm:$0xff]
  %v36 = vld [vmem:[%s2 + $0x10] sm:$0xff]
  %v37 = vld [vmem:[%s2 + $0x18] sm:$0xff]
  %v38 = vld [vmem:[%s2 + $0x20] sm:$0xff]
  %v39 = vld [vmem:[%s2 + $0x28] sm:$0xff]
  %v40 = vld [vmem:[%s3] sm:$0xff]
  %v41 = vld [vmem:[%s3 + $0x8] sm:$0xff]
  %v42 = vld [vmem:[%s3 + $0x10] sm:$0xff]
  %v43 = vld [vmem:[%s3 + $0x18] sm:$0xff]
  %v44 = vld [vmem:[%s3 + $0x20] sm:$0xff]
  %v45 = vld [vmem:[%s3 + $0x28] sm:$0xff]
  %v46 = vld [vmem:[%s4] sm:$0xff]
  %v47 = vld [vmem:[%s4 + $0x8] sm:$0xff]
  %v48 = vld [vmem:[%s4 + $0x10] sm:$0xff]
  %v49 = vld [vmem:[%s4 + $0x18] sm:$0xff]
  %v50 = vld [vmem:[%s4 + $0x20] sm:$0xff]
  %v51 = vld [vmem:[%s4 + $0x28] sm:$0xff]
  %v52 = vlaneseq
  %v53 = vand.u32 %v52, 127
  %54 = vset.pattern.permute.xlu0 0
  %55 = vperm.xlu0 %54, %v34
  %v56 = vpop.permute.xlu0 %55
  %57 = vset.pattern.permute.xlu0 0
  %58 = vperm.xlu0 %57, %v35
  %v59 = vpop.permute.xlu0 %58
  %60 = vset.pattern.permute.xlu0 0
  %61 = vperm.xlu0 %60, %v36
  %v62 = vpop.permute.xlu0 %61
  %63 = vset.pattern.permute.xlu0 0
  %64 = vperm.xlu0 %63, %v37
  %v65 = vpop.permute.xlu0 %64
  %66 = vset.pattern.permute.xlu0 0
  %67 = vperm.xlu0 %66, %v38
  %v68 = vpop.permute.xlu0 %67
  %69 = vset.pattern.permute.xlu0 0
  %70 = vperm.xlu0 %69, %v39
  %v71 = vpop.permute.xlu0 %70
  %vm72 = vcmp.eq.s32.totalorder %v56, %v53
  %vm73 = vcmp.eq.s32.totalorder %v59, %v53
  %vm74 = vcmp.eq.s32.totalorder %v62, %v53
  %vm75 = vcmp.eq.s32.totalorder %v65, %v53
  %vm76 = vcmp.eq.s32.totalorder %v68, %v53
  %vm77 = vcmp.eq.s32.totalorder %v71, %v53
  %v78 = vsel %vm72, 1, 0
  %v79 = vsel %vm73, 1, 0
  %v80 = vsel %vm74, 1, 0
  %v81 = vsel %vm75, 1, 0
  %v82 = vsel %vm76, 1, 0
  %v83 = vsel %vm77, 1, 0
  %v84 = vcvt.s32.f32 %v78
  %v85 = vcvt.s32.f32 %v79
  %v86 = vcvt.s32.f32 %v80
  %v87 = vcvt.s32.f32 %v81
  %v88 = vcvt.s32.f32 %v82
  %v89 = vcvt.s32.f32 %v83
  %90 = vset.pattern.permute.xlu0 0
  %91 = vperm.xlu0 %90, %v40
  %v92 = vpop.permute.xlu0 %91
  %93 = vset.pattern.permute.xlu0 0
  %94 = vperm.xlu0 %93, %v41
  %v95 = vpop.permute.xlu0 %94
  %96 = vset.pattern.permute.xlu0 0
  %97 = vperm.xlu0 %96, %v42
  %v98 = vpop.permute.xlu0 %97
  %99 = vset.pattern.permute.xlu0 0
  %100 = vperm.xlu0 %99, %v43
  %v101 = vpop.permute.xlu0 %100
  %102 = vset.pattern.permute.xlu0 0
  %103 = vperm.xlu0 %102, %v44
  %v104 = vpop.permute.xlu0 %103
  %105 = vset.pattern.permute.xlu0 0
  %106 = vperm.xlu0 %105, %v45
  %v107 = vpop.permute.xlu0 %106
  %vm108 = vcmp.eq.s32.totalorder %v92, %v53
  %vm109 = vcmp.eq.s32.totalorder %v95, %v53
  %vm110 = vcmp.eq.s32.totalorder %v98, %v53
  %vm111 = vcmp.eq.s32.totalorder %v101, %v53
  %vm112 = vcmp.eq.s32.totalorder %v104, %v53
  %vm113 = vcmp.eq.s32.totalorder %v107, %v53
  %v114 = vsel %vm108, 1, 0
  %v115 = vsel %vm109, 1, 0
  %v116 = vsel %vm110, 1, 0
  %v117 = vsel %vm111, 1, 0
  %v118 = vsel %vm112, 1, 0
  %v119 = vsel %vm113, 1, 0
  %v120 = vcvt.s32.f32 %v114
  %v121 = vcvt.s32.f32 %v115
  %v122 = vcvt.s32.f32 %v116
  %v123 = vcvt.s32.f32 %v117
  %v124 = vcvt.s32.f32 %v118
  %v125 = vcvt.s32.f32 %v119
  %vm126 = vcmask 408576
  %v128 = vsel %vm126, %v84, 0
  %v131 = vsel %vm126, %v85, 0
  %v134 = vsel %vm126, %v86, 0
  %v137 = vsel %vm126, %v87, 0
  %v140 = vsel %vm126, %v88, 0
  %v143 = vsel %vm126, %v89, 0
  %vm145 = vcmask 1041408
  %v147 = vsel %vm145, %v26, 0
  %149 = vmatprep.subr.mxu0 0.0
  %150 = vmatpush1.msra.mxu0 %v20
  %151 = vmatprep.subr.mxu0 0.0
  %152 = vmatpush1.msra.mxu0 %v21
  %153 = vmatprep.subr.mxu0 0.0
  %154 = vmatpush1.msra.mxu0 %v22
  %155 = vmatprep.subr.mxu0 0.0
  %156 = vmatpush1.msra.mxu0 %v23
  %157 = vmatprep.subr.mxu0 0.0
  %158 = vmatpush1.msra.mxu0 %v24
  %159 = vmatprep.subr.mxu0 0.0
  %160 = vmatpush1.msra.mxu0 %v25
  %161 = vmatprep.subr.mxu0 0.0
  %162 = vmatpush1.msra.mxu0 %v147
  %163 = vmatprep.subr.mxu0 0.0
  %164 = vmatpush1.msra.mxu0 0.0
  %165 = vmatprep.subr.mxu0 0.0
  %166 = vmatpush1.msra.mxu0 0.0
  %167 = vmatprep.subr.mxu0 0.0
  %168 = vmatpush1.msra.mxu0 0.0
  %169 = vmatprep.subr.mxu0 0.0
  %170 = vmatpush1.msra.mxu0 0.0
  %171 = vmatprep.subr.mxu0 0.0
  %172 = vmatpush1.msra.mxu0 0.0
  %173 = vmatprep.subr.mxu0 0.0
  %174 = vmatpush1.msra.mxu0 0.0
  %175 = vmatprep.subr.mxu0 0.0
  %176 = vmatpush1.msra.mxu0 0.0
  %177 = vmatprep.subr.mxu0 0.0
  %178 = vmatpush1.msra.mxu0 0.0
  %179 = vmatprep.subr.mxu0 0.0
  %180 = vmatpush1.msra.mxu0 0.0
  %181 = vmatprep.subr.mxu0 0.0
  %182 = vmatpush1.msra.mxu0 0.0
  %183 = vmatprep.subr.mxu0 0.0
  %184 = vmatpush1.msra.mxu0 0.0
  %185 = vmatprep.subr.mxu0 0.0
  %186 = vmatpush1.msra.mxu0 0.0
  %187 = vmatprep.subr.mxu0 0.0
  %188 = vmatpush1.msra.mxu0 0.0
  %189 = vmatprep.subr.mxu0 0.0
  %190 = vmatpush1.msra.mxu0 0.0
  %191 = vmatprep.subr.mxu0 0.0
  %192 = vmatpush1.msra.mxu0 0.0
  %193 = vmatprep.subr.mxu0 0.0
  %194 = vmatpush1.msra.mxu0 0.0
  %195 = vmatprep.subr.mxu0 0.0
  %196 = vmatpush1.msra.mxu0 0.0
  %197 = vmatprep.subr.mxu0 0.0
  %198 = vmatpush1.msra.mxu0 0.0
  %199 = vmatprep.subr.mxu0 0.0
  %200 = vmatpush1.msra.mxu0 0.0
  %201 = vmatprep.subr.mxu0 0.0
  %202 = vmatpush1.msra.mxu0 0.0
  %203 = vmatprep.subr.mxu0 0.0
  %204 = vmatpush1.msra.mxu0 0.0
  %205 = vmatprep.subr.mxu0 0.0
  %206 = vmatpush1.msra.mxu0 0.0
  %207 = vmatprep.subr.mxu0 0.0
  %208 = vmatpush1.msra.mxu0 0.0
  %209 = vmatprep.subr.mxu0 0.0
  %210 = vmatpush1.msra.mxu0 0.0
  %211 = vmatprep.subr.mxu0 0.0
  %212 = vmatpush1.msra.mxu0 0.0
  %213 = vmatprep.mubr.f32.mxu0 0.0
  %214 = vmatmul.mubr.f32.gmra.mrb[0].mxu0 %v128
  %v215 = vpop.f32.mrb[0].mxu0
  %v216 = vadd.f32 0.0, %v215
  %v217 = vpop.f32.mrb[0].mxu0
  %218 = vmatprep.mubr.f32.mxu0 0.0
  %219 = vmatmul.mubr.f32.gmra.mrb[0].mxu0 %v131
  %v220 = vpop.f32.mrb[0].mxu0
  %v221 = vadd.f32 0.0, %v220
  %v222 = vpop.f32.mrb[0].mxu0
  %223 = vmatprep.mubr.f32.mxu0 0.0
  %224 = vmatmul.mubr.f32.gmra.mrb[0].mxu0 %v134
  %v225 = vpop.f32.mrb[0].mxu0
  %v226 = vadd.f32 0.0, %v225
  %v227 = vpop.f32.mrb[0].mxu0
  %228 = vmatprep.mubr.f32.mxu0 0.0
  %229 = vmatmul.mubr.f32.gmra.mrb[0].mxu0 %v137
  %v230 = vpop.f32.mrb[0].mxu0
  %v231 = vadd.f32 0.0, %v230
  %v232 = vpop.f32.mrb[0].mxu0
  %233 = vmatprep.mubr.f32.mxu0 0.0
  %234 = vmatmul.mubr.f32.gmra.mrb[0].mxu0 %v140
  %v235 = vpop.f32.mrb[0].mxu0
  %v236 = vadd.f32 0.0, %v235
  %v237 = vpop.f32.mrb[0].mxu0
  %238 = vmatprep.mubr.f32.mxu0 0.0
  %239 = vmatmul.mubr.f32.gmra.mrb[0].mxu0 %v143
  %v240 = vpop.f32.mrb[0].mxu0
  %v241 = vadd.f32 0.0, %v240
  %v242 = vpop.f32.mrb[0].mxu0
  %243 = vdwg.mxu0
  %v245 = vsel %vm126, %v120, 0
  %v248 = vsel %vm126, %v121, 0
  %v251 = vsel %vm126, %v122, 0
  %v254 = vsel %vm126, %v123, 0
  %v257 = vsel %vm126, %v124, 0
  %v260 = vsel %vm126, %v125, 0
  %v263 = vsel %vm145, %v33, 0
  %265 = vmatprep.subr.mxu0 0.0
  %266 = vmatpush1.msra.mxu0 %v27
  %267 = vmatprep.subr.mxu0 0.0
  %268 = vmatpush1.msra.mxu0 %v28
  %269 = vmatprep.subr.mxu0 0.0
  %270 = vmatpush1.msra.mxu0 %v29
  %271 = vmatprep.subr.mxu0 0.0
  %272 = vmatpush1.msra.mxu0 %v30
  %273 = vmatprep.subr.mxu0 0.0
  %274 = vmatpush1.msra.mxu0 %v31
  %275 = vmatprep.subr.mxu0 0.0
  %276 = vmatpush1.msra.mxu0 %v32
  %277 = vmatprep.subr.mxu0 0.0
  %278 = vmatpush1.msra.mxu0 %v263
  %279 = vmatprep.subr.mxu0 0.0
  %280 = vmatpush1.msra.mxu0 0.0
  %281 = vmatprep.subr.mxu0 0.0
  %282 = vmatpush1.msra.mxu0 0.0
  %283 = vmatprep.subr.mxu0 0.0
  %284 = vmatpush1.msra.mxu0 0.0
  %285 = vmatprep.subr.mxu0 0.0
  %286 = vmatpush1.msra.mxu0 0.0
  %287 = vmatprep.subr.mxu0 0.0
  %288 = vmatpush1.msra.mxu0 0.0
  %289 = vmatprep.subr.mxu0 0.0
  %290 = vmatpush1.msra.mxu0 0.0
  %291 = vmatprep.subr.mxu0 0.0
  %292 = vmatpush1.msra.mxu0 0.0
  %293 = vmatprep.subr.mxu0 0.0
  %294 = vmatpush1.msra.mxu0 0.0
  %295 = vmatprep.subr.mxu0 0.0
  %296 = vmatpush1.msra.mxu0 0.0
  %297 = vmatprep.subr.mxu0 0.0
  %298 = vmatpush1.msra.mxu0 0.0
  %299 = vmatprep.subr.mxu0 0.0
  %300 = vmatpush1.msra.mxu0 0.0
  %301 = vmatprep.subr.mxu0 0.0
  %302 = vmatpush1.msra.mxu0 0.0
  %303 = vmatprep.subr.mxu0 0.0
  %304 = vmatpush1.msra.mxu0 0.0
  %305 = vmatprep.subr.mxu0 0.0
  %306 = vmatpush1.msra.mxu0 0.0
  %307 = vmatprep.subr.mxu0 0.0
  %308 = vmatpush1.msra.mxu0 0.0
  %309 = vmatprep.subr.mxu0 0.0
  %310 = vmatpush1.msra.mxu0 0.0
  %311 = vmatprep.subr.mxu0 0.0
  %312 = vmatpush1.msra.mxu0 0.0
  %313 = vmatprep.subr.mxu0 0.0
  %314 = vmatpush1.msra.mxu0 0.0
  %315 = vmatprep.subr.mxu0 0.0
  %316 = vmatpush1.msra.mxu0 0.0
  %317 = vmatprep.subr.mxu0 0.0
  %318 = vmatpush1.msra.mxu0 0.0
  %319 = vmatprep.subr.mxu0 0.0
  %320 = vmatpush1.msra.mxu0 0.0
  %321 = vmatprep.subr.mxu0 0.0
  %322 = vmatpush1.msra.mxu0 0.0
  %323 = vmatprep.subr.mxu0 0.0
  %324 = vmatpush1.msra.mxu0 0.0
  %325 = vmatprep.subr.mxu0 0.0
  %326 = vmatpush1.msra.mxu0 0.0
  %327 = vmatprep.subr.mxu0 0.0
  %328 = vmatpush1.msra.mxu0 0.0
  %329 = vmatprep.mubr.f32.mxu0 0.0
  %330 = vmatmul.mubr.f32.gmra.mrb[0].mxu0 %v245
  %v331 = vpop.f32.mrb[0].mxu0
  %v332 = vadd.f32 0.0, %v331
  %v333 = vpop.f32.mrb[0].mxu0
  %334 = vmatprep.mubr.f32.mxu0 0.0
  %335 = vmatmul.mubr.f32.gmra.mrb[0].mxu0 %v248
  %v336 = vpop.f32.mrb[0].mxu0
  %v337 = vadd.f32 0.0, %v336
  %v338 = vpop.f32.mrb[0].mxu0
  %339 = vmatprep.mubr.f32.mxu0 0.0
  %340 = vmatmul.mubr.f32.gmra.mrb[0].mxu0 %v251
  %v341 = vpop.f32.mrb[0].mxu0
  %v342 = vadd.f32 0.0, %v341
  %v343 = vpop.f32.mrb[0].mxu0
  %344 = vmatprep.mubr.f32.mxu0 0.0
  %345 = vmatmul.mubr.f32.gmra.mrb[0].mxu0 %v254
  %v346 = vpop.f32.mrb[0].mxu0
  %v347 = vadd.f32 0.0, %v346
  %v348 = vpop.f32.mrb[0].mxu0
  %349 = vmatprep.mubr.f32.mxu0 0.0
  %350 = vmatmul.mubr.f32.gmra.mrb[0].mxu0 %v257
  %v351 = vpop.f32.mrb[0].mxu0
  %v352 = vadd.f32 0.0, %v351
  %v353 = vpop.f32.mrb[0].mxu0
  %354 = vmatprep.mubr.f32.mxu0 0.0
  %355 = vmatmul.mubr.f32.gmra.mrb[0].mxu0 %v260
  %v356 = vpop.f32.mrb[0].mxu0
  %v357 = vadd.f32 0.0, %v356
  %v358 = vpop.f32.mrb[0].mxu0
  %359 = vdwg.mxu0
  %v360 = vmul.f32 %v216, %v332
  %v361 = vmul.f32 %v221, %v337
  %v362 = vmul.f32 %v226, %v342
  %v363 = vmul.f32 %v231, %v347
  %v364 = vmul.f32 %v236, %v352
  %v365 = vmul.f32 %v241, %v357
  %vm366 = vcmask 261120
  %v367 = vsel %vm366, %v360, 0.0
  %368 = vadd.xlane.f32.xlu0 %v367
  %v369 = vpop.xlane.xlu0 %368
  %v370 = vsel %vm366, %v361, 0.0
  %371 = vadd.xlane.f32.xlu0 %v370
  %v372 = vpop.xlane.xlu0 %371
  %v373 = vsel %vm366, %v362, 0.0
  %374 = vadd.xlane.f32.xlu0 %v373
  %v375 = vpop.xlane.xlu0 %374
  %v376 = vsel %vm366, %v363, 0.0
  %377 = vadd.xlane.f32.xlu0 %v376
  %v378 = vpop.xlane.xlu0 %377
  %v379 = vsel %vm366, %v364, 0.0
  %380 = vadd.xlane.f32.xlu0 %v379
  %v381 = vpop.xlane.xlu0 %380
  %v382 = vsel %vm366, %v365, 0.0
  %383 = vadd.xlane.f32.xlu0 %v382
  %v384 = vpop.xlane.xlu0 %383
  %v385 = vmul.f32 %v46, %v369
  %v386 = vmul.f32 %v47, %v372
  %v387 = vmul.f32 %v48, %v375
  %v388 = vmul.f32 %v49, %v378
  %v389 = vmul.f32 %v50, %v381
  %v390 = vmul.f32 %v51, %v384
  %v391 = vmin.f32 %v385, 0.0
  %v392 = vmin.f32 %v386, 0.0
  %v393 = vmin.f32 %v387, 0.0
  %v394 = vmin.f32 %v388, 0.0
  %v395 = vmin.f32 %v389, 0.0
  %v396 = vmin.f32 %v390, 0.0
  %v397 = vand.u32 2147483647, %v385
  %v398 = vand.u32 2147483647, %v386
  %v399 = vand.u32 2147483647, %v387
  %v400 = vand.u32 2147483647, %v388
  %v401 = vand.u32 2147483647, %v389
  %v402 = vand.u32 2147483647, %v390
  %v403 = vsub.f32 0.0, %v397
  %v404 = vsub.f32 0.0, %v398
  %v405 = vsub.f32 0.0, %v399
  %v406 = vsub.f32 0.0, %v400
  %v407 = vsub.f32 0.0, %v401
  %v408 = vsub.f32 0.0, %v402
  %v409 = vmul.f32 %v403, 1.442695
  %v410 = vpow.pop %v409
  %v411 = vmul.f32 %v404, 1.442695
  %v412 = vpow.pop %v411
  %v413 = vmul.f32 %v405, 1.442695
  %v414 = vpow.pop %v413
  %v415 = vmul.f32 %v406, 1.442695
  %v416 = vpow.pop %v415
  %v417 = vmul.f32 %v407, 1.442695
  %v418 = vpow.pop %v417
  %v419 = vmul.f32 %v408, 1.442695
  %v420 = vpow.pop %v419
  %v421 = vadd.f32 %v410, 1.0
  %v422 = vlog2.pop %v421
  %v423 = vmul.f32 %v422, 0.6931472
  %v424 = vmul.f32 -0.5, %v410
  %v425 = vadd.f32 %v424, 1.0
  %v426 = vmul.f32 %v425, %v410
  %v427 = vand.u32 2147483647, %v410
  %vm428 = vcmp.lt.f32.partialorder %v427, 0.0004427343
  %v429 = vsel %vm428, %v426, %v423
  %v430 = vadd.f32 %v412, 1.0
  %v431 = vlog2.pop %v430
  %v432 = vmul.f32 %v431, 0.6931472
  %v433 = vmul.f32 -0.5, %v412
  %v434 = vadd.f32 %v433, 1.0
  %v435 = vmul.f32 %v434, %v412
  %v436 = vand.u32 2147483647, %v412
  %vm437 = vcmp.lt.f32.partialorder %v436, 0.0004427343
  %v438 = vsel %vm437, %v435, %v432
  %v439 = vadd.f32 %v414, 1.0
  %v440 = vlog2.pop %v439
  %v441 = vmul.f32 %v440, 0.6931472
  %v442 = vmul.f32 -0.5, %v414
  %v443 = vadd.f32 %v442, 1.0
  %v444 = vmul.f32 %v443, %v414
  %v445 = vand.u32 2147483647, %v414
  %vm446 = vcmp.lt.f32.partialorder %v445, 0.0004427343
  %v447 = vsel %vm446, %v444, %v441
  %v448 = vadd.f32 %v416, 1.0
  %v449 = vlog2.pop %v448
  %v450 = vmul.f32 %v449, 0.6931472
  %v451 = vmul.f32 -0.5, %v416
  %v452 = vadd.f32 %v451, 1.0
  %v453 = vmul.f32 %v452, %v416
  %v454 = vand.u32 2147483647, %v416
  %vm455 = vcmp.lt.f32.partialorder %v454, 0.0004427343
  %v456 = vsel %vm455, %v453, %v450
  %v457 = vadd.f32 %v418, 1.0
  %v458 = vlog2.pop %v457
  %v459 = vmul.f32 %v458, 0.6931472
  %v460 = vmul.f32 -0.5, %v418
  %v461 = vadd.f32 %v460, 1.0
  %v462 = vmul.f32 %v461, %v418
  %v463 = vand.u32 2147483647, %v418
  %vm464 = vcmp.lt.f32.partialorder %v463, 0.0004427343
  %v465 = vsel %vm464, %v462, %v459
  %v466 = vadd.f32 %v420, 1.0
  %v467 = vlog2.pop %v466
  %v468 = vmul.f32 %v467, 0.6931472
  %v469 = vmul.f32 -0.5, %v420
  %v470 = vadd.f32 %v469, 1.0
  %v471 = vmul.f32 %v470, %v420
  %v472 = vand.u32 2147483647, %v420
  %vm473 = vcmp.lt.f32.partialorder %v472, 0.0004427343
  %v474 = vsel %vm473, %v471, %v468
  %v475 = vsub.f32 %v391, %v429
  %v476 = vsub.f32 %v392, %v438
  %v477 = vsub.f32 %v393, %v447
  %v478 = vsub.f32 %v394, %v456
  %v479 = vsub.f32 %v395, %v465
  %v480 = vsub.f32 %v396, %v474
  %v481 = vand.u32 2147483647, %v46
  %v482 = vand.u32 2147483647, %v47
  %v483 = vand.u32 2147483647, %v48
  %v484 = vand.u32 2147483647, %v49
  %v485 = vand.u32 2147483647, %v50
  %v486 = vand.u32 2147483647, %v51
  %v487 = vmul.f32 %v481, %v475
  %v488 = vmul.f32 %v482, %v476
  %v489 = vmul.f32 %v483, %v477
  %v490 = vmul.f32 %v484, %v478
  %v491 = vmul.f32 %v485, %v479
  %v492 = vmul.f32 %v486, %v480
  %vm493 = vcmask 7168
  %494 = vst.msk [vmem:[%s5] sm:$0xff] %vm493, %v487
  %495 = vst.msk [vmem:[%s5 + $0x8] sm:$0xff] %vm493, %v488
  %496 = vst.msk [vmem:[%s5 + $0x10] sm:$0xff] %vm493, %v489
  %497 = vst.msk [vmem:[%s5 + $0x18] sm:$0xff] %vm493, %v490
  %498 = vst.msk [vmem:[%s5 + $0x20] sm:$0xff] %vm493, %v491
  %499 = vst.msk [vmem:[%s5 + $0x28] sm:$0xff] %vm493, %v492
  // Predicated region
  $region22: #{line_model_forward.1} parent=0 // pred_check
    _
  $region23: #{line_model_forward.1} parent=0 // pred_check_branch
    %501 = sbr.rel (0) target = $region25
  $region24: #{line_model_forward.1} parent=0 // pred_region
    _
  $region25: #{line_model_forward.1} parent=0 // pred_fallthru
    _
  // Predicated region
  $region26: #{line_model_forward.1} parent=0 // pred_check
    _
  $region27: #{line_model_forward.1} parent=0 // pred_check_branch
    %503 = sbr.rel (0) target = $region29
  $region28: #{line_model_forward.1} parent=0 // pred_region
    _
  $region29: #{line_model_forward.1} parent=0 // pred_fallthru
    _

</llo_original>
